<compile_context>
chip_gen: v6e
topology: v6e:2x2x1
jax: 0.10.0
libtpu: 0.0.40
codegen_flags: <defaults>
</compile_context>

<pallas_src>
import functools
import math

import jax
import jax.numpy as jnp
from jax import lax
from jax.experimental import pallas as pl
from jax.experimental.pallas import tpu as pltpu


def _make_kernel(s_out):
    """Kernel for one (batch, row-tile) block."""

    def kernel(xs_ref, w_ref, b_ref, o_ref):
        # xs_ref: (9*C_in, s_out + 2)  bf16 -- K=(kd,kh,ci) on sublanes, flat (rows, W_pad) on lanes
        # w_ref : (3, C_out, 9*C_in)   bf16 -- one (C_out, K) slab per kw tap
        # b_ref : (C_out, 1)           f32
        # o_ref : (C_out, s_out)             -- lane-dense output tile
        acc = jnp.dot(w_ref[0], xs_ref[:, pl.ds(0, s_out)],
                      preferred_element_type=jnp.float32)
        for kw in (1, 2):  # static 3-tap loop; each shift is a contiguous lane-offset load
            acc = acc + jnp.dot(w_ref[kw], xs_ref[:, pl.ds(kw, s_out)],
                                preferred_element_type=jnp.float32)
        # bias + ReLU once per tile, f32 epilogue (v5e-safe), narrow only at the final store
        o_ref[...] = jnp.maximum(acc + b_ref[...], 0.0).astype(o_ref.dtype)

    return kernel


@functools.partial(jax.jit, static_argnames=("stride", "compute_dtype", "out_dtype"))
def downsampling_conv_block(x_ncdhw, weight_pt, bias, stride=(2, 2, 1),
                            compute_dtype=jnp.bfloat16, out_dtype=jnp.float32):
    """Forward of DownsamplingConvBlock (normalization='none').

    x_ncdhw:  (N, C_in, D, H, W)      -- PyTorch layout
    weight_pt:(C_out, C_in, 3, 3, 3)  -- PyTorch Conv3d weight layout
    bias:     (C_out,)
    returns:  (N, C_out, D_out, H_out, W_out) in out_dtype
    """
    N, C_in, D, H, W = x_ncdhw.shape
    C_out = weight_pt.shape[0]
    sd, sh, sw = stride
    # TODO(synk): general W-stride not supported; module default stride=(2,2,1) has sw == 1.
    assert sw == 1, "kernel assumes stride 1 along W (module default stride=(2,2,1))"

    D_out = (D + 2 - 3) // sd + 1
    H_out = (H + 2 - 3) // sh + 1
    W_out = (W + 2 - 3) // sw + 1           # == W
    W_pad = W + 2
    K9 = 9 * C_in
    in_itemsize = jnp.dtype(compute_dtype).itemsize
    out_itemsize = jnp.dtype(out_dtype).itemsize

    # ------------------------- generation-aware tile sizing -------------------------
    try:
        vmem_cap = int(getattr(pltpu.get_tpu_info(), "vmem_capacity_bytes", 64 << 20))
    except Exception:  # pragma: no cover -- conservative fallback (v7x per-core VMEM)
        vmem_cap = 64 << 20
    vmem_limit = int(min(vmem_cap // 2, 64 << 20))   # 64 MiB on v5e/v6e, 32 MiB on v7x

    weight_bytes = 3 * C_out * K9 * in_itemsize
    # grid-invariant residents (weights are still double-buffered by the pipeline) + scratch slack
    fixed_bytes = 2 * weight_bytes + 2 * C_out * 4 + (2 << 20)
    tile_budget = max(1 << 20, vmem_limit - fixed_bytes - (2 << 20))

    def tile_bytes(rows):  # double-buffered input tile + double-buffered output tile
        s = rows * W_pad
        return ((s + 2) * K9 * in_itemsize + s * C_out * out_itemsize) * 2

    LANE_TARGET = 2048                                # wide lane axis: amortize grid overhead
    rows_target = max(1, math.ceil(LANE_TARGET / W_pad))

    # Prefer whole depth slices per tile (td slices -> tr = td*H_out rows).
    td = max(1, min(D_out, math.ceil(rows_target / H_out)))
    while td > 1 and tile_bytes(td * H_out) > tile_budget:
        td -= 1
    # keep both megacore TensorCores busy when the batch is tiny
    while td > 1 and N * math.ceil(D_out / td) < 2:
        td -= 1
    # prefer a td that divides D_out (avoids junk depth slices) when it is close enough
    for cand in range(td, 0, -1):
        if D_out % cand == 0:
            if cand * 2 >= td:
                td = cand
            break

    if tile_bytes(td * H_out) <= tile_budget:
        tr = td * H_out                       # rows per tile (whole depth slices)
        n_rt = math.ceil(D_out / td)
        D_out_pad = n_rt * td
    else:
        # even one depth slice busts the VMEM budget (v7x small-VMEM case) -> split H_out
        divisors = [c for c in range(1, H_out + 1) if H_out % c == 0]
        fitting = [c for c in divisors if tile_bytes(c) <= tile_budget]
        th = max(fitting) if fitting else 1
        tr = th
        n_rt = D_out * (H_out // th)
        D_out_pad = D_out

    S_core = tr * W_pad                       # output lane width per tile (lane-dense)
    S_in = S_core + 2                         # +2 so the kw=1,2 shifted loads stay in-bounds
    vmem_limit = int(min(int(vmem_cap * 0.9),
                         max(vmem_limit, fixed_bytes + tile_bytes(tr))))

    # ------------------- wrapper-side layout plumbing (bf16 from the start) -------------------
    x = x_ncdhw.astype(compute_dtype)                              # cast BEFORE all passes
    # depth padding for full tiles is folded into the conv padding (no separate pad pass)
    d_hi = 1 + max(0, sd * (D_out_pad - 1) + 1 - D)
    x_pad = jnp.pad(x, ((0, 0), (0, 0), (1, d_hi), (1, 1), (1, 1)))

    # space-to-depth in NCDHW order: taps land directly next to C_in -> single transpose below
    slabs = []
    for kd in range(3):
        for kh in range(3):
            slab = x_pad[:, :, kd::sd, kh::sh, :]
            slabs.append(slab[:, :, :D_out_pad, :H_out, :])        # (N, Ci, D_out_pad, H_out, W_pad)
    xs = jnp.stack(slabs, axis=1)                                  # (N, 9, Ci, D_out_pad, H_out, W_pad)
    # rows = (d, h) row-major; split rows into tiles (D_out_pad*H_out == n_rt*tr by construction)
    xs = xs.reshape(N, 9, C_in, n_rt, tr, W_pad)
    xs = jnp.transpose(xs, (0, 3, 1, 2, 4, 5))                     # (N, n_rt, 9, Ci, tr, W_pad)
    xs = xs.reshape(N, n_rt, K9, S_core)
    xs = jnp.pad(xs, ((0, 0), (0, 0), (0, 0), (0, 2)))             # 2 halo lanes (values unused)

    # weight: (C_out, C_in, kd, kh, kw) -> (kw, C_out, (kd, kh, ci)); bf16 for the MXU
    w_r = jnp.transpose(weight_pt, (4, 0, 2, 3, 1)).reshape(3, C_out, K9).astype(compute_dtype)
    b2 = bias.reshape(C_out, 1).astype(jnp.float32)                # f32 epilogue

    flops = 2 * N * D_out * H_out * W_out * 27 * C_in * C_out
    bytes_accessed = (N * n_rt * K9 * S_in * in_itemsize
                      + w_r.size * in_itemsize + b2.size * 4
                      + N * C_out * n_rt * S_core * out_itemsize)

    out_flat = pl.pallas_call(
        _make_kernel(S_core),
        # output already in (N, C_out, tile, S) order -> epilogue transpose becomes a reshape
        out_shape=jax.ShapeDtypeStruct((N, C_out, n_rt, S_core), out_dtype),
        grid_spec=pltpu.PrefetchScalarGridSpec(
            num_scalar_prefetch=0,
            grid=(N, n_rt),
            in_specs=[
                pl.BlockSpec((None, None, K9, S_in), lambda n, t: (n, t, 0, 0)),
                pl.BlockSpec((3, C_out, K9), lambda n, t: (0, 0, 0)),
                pl.BlockSpec((C_out, 1), lambda n, t: (0, 0)),
            ],
            out_specs=pl.BlockSpec((None, C_out, None, S_core),
                                   lambda n, t: (n, 0, t, 0)),
        ),
        compiler_params=pltpu.CompilerParams(
            dimension_semantics=("parallel", "parallel"),
            vmem_limit_bytes=vmem_limit),
        cost_estimate=pl.CostEstimate(flops=flops, transcendentals=0,
                                      bytes_accessed=bytes_accessed),
    )(xs, w_r, b2)

    # free row-major reshapes; final slice drops the W-halo / junk-depth columns -> NCDHW
    out = out_flat.reshape(N, C_out, n_rt * tr, W_pad)
    out = out.reshape(N, C_out, D_out_pad, H_out, W_pad)
    return out[:, :, :D_out, :, :W_out]


def _reference(x_ncdhw, weight_pt, bias, stride=(2, 2, 1), compute_dtype=jnp.bfloat16):
    """Pure-JAX reference (lax conv) matching PyTorch Conv3d + ReLU semantics at the same
    (bf16-input, f32-accumulate) precision as the kernel."""
    x = jnp.transpose(x_ncdhw, (0, 2, 3, 4, 1)).astype(compute_dtype)    # NDHWC
    w = jnp.transpose(weight_pt, (2, 3, 4, 1, 0)).astype(compute_dtype)  # DHWIO
    y = lax.conv_general_dilated(
        x, w, window_strides=stride,
        padding=((1, 1), (1, 1), (1, 1)),
        dimension_numbers=("NDHWC", "DHWIO", "NDHWC"),
        preferred_element_type=jnp.float32)
    y = jnp.maximum(y + bias[None, None, None, None, :].astype(jnp.float32), 0.0)
    return jnp.transpose(y, (0, 4, 1, 2, 3))


if __name__ == "__main__":
    # small shapes consistent with the module: batch=2, C_in=4, C_out=8, spatial 8x8x8
    N, C_in, C_out = 2, 4, 8
    D = H = W = 8
    stride = (2, 2, 1)

    key = jax.random.PRNGKey(0)
    kx, kw_, kb = jax.random.split(key, 3)
    x = jax.random.normal(kx, (N, C_in, D, H, W), dtype=jnp.float32)
    weight = 0.1 * jax.random.normal(kw_, (C_out, C_in, 3, 3, 3), dtype=jnp.float32)
    bias = 0.1 * jax.random.normal(kb, (C_out,), dtype=jnp.float32)

    out = downsampling_conv_block(x, weight, bias, stride=stride)
    out = jax.block_until_ready(out)

    ref = _reference(x, weight, bias, stride)
    assert out.shape == (N, C_out, D // 2, H // 2, W), out.shape
    max_err = float(jnp.max(jnp.abs(out - ref)))
    assert jnp.allclose(out, ref, atol=2e-2, rtol=2e-2), max_err

    print("KERNEL_OK")
</pallas_src>

<mosaic_0001>
module attributes {stable_mosaic.version = 11 : i64} {
  func.func @kernel(%arg0: i32, %arg1: i32, %arg2: memref<1x1x36x162xbf16, #tpu.memory_space<vmem>>, %arg3: memref<3x8x36xbf16, #tpu.memory_space<vmem>>, %arg4: memref<8x1xf32, #tpu.memory_space<vmem>>, %arg5: memref<1x8x1x160xf32, #tpu.memory_space<vmem>>) attributes {dimension_semantics = [#tpu.dimension_semantics<parallel>, #tpu.dimension_semantics<parallel>], iteration_bounds = array<i64: 2, 1>, scalar_prefetch = 0 : i64, scratch_operands = 0 : i64, tpu.core_type = #tpu.core_type<tc>, window_params = [{transform_indices = @transform_0, window_bounds = array<i64: 1, 1, 36, 162>}, {pipeline_mode = #tpu.pipeline_mode<synchronous>, transform_indices = @transform_1, window_bounds = array<i64: 3, 8, 36>}, {pipeline_mode = #tpu.pipeline_mode<synchronous>, transform_indices = @transform_2, window_bounds = array<i64: 8, 1>}, {transform_indices = @transform_3, window_bounds = array<i64: 1, 8, 1, 160>}]} {
    %c0 = arith.constant 0 : index
    %c0_0 = arith.constant 0 : index
    %c0_1 = arith.constant 0 : index
    %0 = vector.load %arg3[%c0, %c0_0, %c0_1] : memref<3x8x36xbf16, #tpu.memory_space<vmem>>, vector<1x8x36xbf16>
    %1 = vector.shape_cast %0 : vector<1x8x36xbf16> to vector<8x36xbf16>
    %c0_2 = arith.constant 0 : index
    %c0_3 = arith.constant 0 : index
    %c0_4 = arith.constant 0 : index
    %c0_5 = arith.constant 0 : index
    %2 = vector.load %arg2[%c0_2, %c0_3, %c0_4, %c0_5] : memref<1x1x36x162xbf16, #tpu.memory_space<vmem>>, vector<1x1x36x160xbf16>
    %3 = vector.shape_cast %2 : vector<1x1x36x160xbf16> to vector<36x160xbf16>
    %cst = arith.constant dense<0.000000e+00> : vector<8x160xf32>
    %4 = tpu.matmul %1, %3, %cst {dimension_numbers = #tpu.dot_dimension_numbers<[1], [0], [0], [1], [0, 0, 1, 1], [], []>} : vector<8x36xbf16>, vector<36x160xbf16>, vector<8x160xf32> -> vector<8x160xf32>
    %c1 = arith.constant 1 : index
    %c0_6 = arith.constant 0 : index
    %c0_7 = arith.constant 0 : index
    %5 = vector.load %arg3[%c1, %c0_6, %c0_7] : memref<3x8x36xbf16, #tpu.memory_space<vmem>>, vector<1x8x36xbf16>
    %6 = vector.shape_cast %5 : vector<1x8x36xbf16> to vector<8x36xbf16>
    %c0_8 = arith.constant 0 : index
    %c0_9 = arith.constant 0 : index
    %c0_10 = arith.constant 0 : index
    %c1_11 = arith.constant 1 : index
    %7 = vector.load %arg2[%c0_8, %c0_9, %c0_10, %c1_11] : memref<1x1x36x162xbf16, #tpu.memory_space<vmem>>, vector<1x1x36x160xbf16>
    %8 = vector.shape_cast %7 : vector<1x1x36x160xbf16> to vector<36x160xbf16>
    %cst_12 = arith.constant dense<0.000000e+00> : vector<8x160xf32>
    %9 = tpu.matmul %6, %8, %cst_12 {dimension_numbers = #tpu.dot_dimension_numbers<[1], [0], [0], [1], [0, 0, 1, 1], [], []>} : vector<8x36xbf16>, vector<36x160xbf16>, vector<8x160xf32> -> vector<8x160xf32>
    %10 = arith.addf %4, %9 : vector<8x160xf32>
    %c2 = arith.constant 2 : index
    %c0_13 = arith.constant 0 : index
    %c0_14 = arith.constant 0 : index
    %11 = vector.load %arg3[%c2, %c0_13, %c0_14] : memref<3x8x36xbf16, #tpu.memory_space<vmem>>, vector<1x8x36xbf16>
    %12 = vector.shape_cast %11 : vector<1x8x36xbf16> to vector<8x36xbf16>
    %c0_15 = arith.constant 0 : index
    %c0_16 = arith.constant 0 : index
    %c0_17 = arith.constant 0 : index
    %c2_18 = arith.constant 2 : index
    %13 = vector.load %arg2[%c0_15, %c0_16, %c0_17, %c2_18] : memref<1x1x36x162xbf16, #tpu.memory_space<vmem>>, vector<1x1x36x160xbf16>
    %14 = vector.shape_cast %13 : vector<1x1x36x160xbf16> to vector<36x160xbf16>
    %cst_19 = arith.constant dense<0.000000e+00> : vector<8x160xf32>
    %15 = tpu.matmul %12, %14, %cst_19 {dimension_numbers = #tpu.dot_dimension_numbers<[1], [0], [0], [1], [0, 0, 1, 1], [], []>} : vector<8x36xbf16>, vector<36x160xbf16>, vector<8x160xf32> -> vector<8x160xf32>
    %16 = arith.addf %10, %15 : vector<8x160xf32>
    %c0_20 = arith.constant 0 : index
    %c0_21 = arith.constant 0 : index
    %17 = vector.load %arg4[%c0_20, %c0_21] : memref<8x1xf32, #tpu.memory_space<vmem>>, vector<8x1xf32>
    %18 = vector.broadcast %17 : vector<8x1xf32> to vector<8x160xf32>
    %19 = arith.addf %16, %18 : vector<8x160xf32>
    %cst_22 = arith.constant 0.000000e+00 : f32
    %20 = vector.broadcast %cst_22 : f32 to vector<8x160xf32>
    %21 = arith.maximumf %19, %20 : vector<8x160xf32>
    %c0_23 = arith.constant 0 : index
    %c0_24 = arith.constant 0 : index
    %c0_25 = arith.constant 0 : index
    %c0_26 = arith.constant 0 : index
    %22 = vector.load %arg5[%c0_23, %c0_24, %c0_25, %c0_26] : memref<1x8x1x160xf32, #tpu.memory_space<vmem>>, vector<1x8x1x160xf32>
    %23 = vector.shape_cast %22 : vector<1x8x1x160xf32> to vector<8x160xf32>
    %24 = vector.shape_cast %21 : vector<8x160xf32> to vector<1x8x1x160xf32>
    tpu.vector_store %arg5[%c0_23, %c0_24, %c0_25, %c0_26], %24 {strides = array<i32>} : memref<1x8x1x160xf32, #tpu.memory_space<vmem>>, vector<1x8x1x160xf32>,
    return
  }
  func.func @transform_0(%arg0: i32, %arg1: i32) -> (i32, i32, i32, i32) {
    %c0_i32 = arith.constant 0 : i32
    %c0_i32_0 = arith.constant 0 : i32
    %c0_i32_1 = arith.constant 0 : i32
    return %arg0, %arg1, %c0_i32, %c0_i32_0 : i32, i32, i32, i32
  }
  func.func @transform_1(%arg0: i32, %arg1: i32) -> (i32, i32, i32) {
    %c0_i32 = arith.constant 0 : i32
    %c0_i32_0 = arith.constant 0 : i32
    %c0_i32_1 = arith.constant 0 : i32
    %c0_i32_2 = arith.constant 0 : i32
    return %c0_i32, %c0_i32_0, %c0_i32_1 : i32, i32, i32
  }
  func.func @transform_2(%arg0: i32, %arg1: i32) -> (i32, i32) {
    %c0_i32 = arith.constant 0 : i32
    %c0_i32_0 = arith.constant 0 : i32
    %c0_i32_1 = arith.constant 0 : i32
    return %c0_i32, %c0_i32_0 : i32, i32
  }
  func.func @transform_3(%arg0: i32, %arg1: i32) -> (i32, i32, i32, i32) {
    %c0_i32 = arith.constant 0 : i32
    %c0_i32_0 = arith.constant 0 : i32
    %c0_i32_1 = arith.constant 0 : i32
    return %arg0, %c0_i32, %arg1, %c0_i32_0 : i32, i32, i32, i32
  }
}

</mosaic_0001>

<llo_original>
// kernel: downsampling_conv_block.1
$region0: #{downsampling_conv_block.1}
  #allocation0 [shape = 'u32[]', space=smem, size = 0x4, offset = 0x4, fixed_abs, tag = 'smem constant byte address 0x4 - core index']
  #allocation1 [shape = 'u32[144,128]{1,0:T(1,128)}', space=vmem, size = 0x12000, scoped, tag = 'internal scratch']
  %s0 = inlined_call_operand.vmem [shape: bf16[2,1,36,162], index: 0, kind: input, shape index: {}]
  %s1 = inlined_call_operand.vmem [shape: bf16[3,8,36], index: 1, kind: input, shape index: {}]
  %s2 = inlined_call_operand.vmem [shape: f32[8,1], index: 2, kind: input, shape index: {}]
  %s3 = inlined_call_operand.vmem [shape: f32[2,8,1,160], index: 3, kind: output, shape index: {}]
  %s4 = sld [smem:[#allocation0]]
  $region45: #{downsampling_conv_block.1} parent=0
    _
  %s6 = ssub.s32 1, %s4
  %s7 = scalar_select 0, %s6, %s4
  loop: start=0, step=1, limit=4
  $region2: #{downsampling_conv_block.1} parent=0 // loop_pre_header
    _
  $region3: #{downsampling_conv_block.1} parent=0 // loop_header
    %s9 = sphi 0, %s13
    %p10 = scmp.ge.s32.totalorder %s9, 4
    %s16 = sphi 0, %s28
    %s17 = sphi 0, %s24
    %s18 = sphi 0, %s16
    %s19 = sphi 0, %s17
    %s20 = sphi 0, %s18
    %s21 = sphi 0, %s19
    %s33 = sphi 0, %s35
    %s36 = sphi 0, %s33
    %s37 = sphi 0, %s36
    %s53 = sphi 0, %s37
    %s57 = sphi 0, %s57
    %s59 = sphi 0, %s57
    %s60 = sphi 0, %s59
    %s74 = sphi 0, %s60
    %s78 = sphi 0, %s78
    %s80 = sphi 0, %s78
    %s81 = sphi 0, %s80
    %s95 = sphi 0, %s81
    %s103 = sphi 0, %s105
    %s106 = sphi 0, %s103
    %s107 = sphi 0, %s106
    %s123 = sphi 0, %s107
  $region4: #{downsampling_conv_block.1} parent=0 // loop_header_branch
    %12 = sbr.rel (%p10) target = $region8
  $region5: #{downsampling_conv_block.1} parent=0 // loop_body
    %s14 = ssub.s32 %s9, 1
    %s15 = ssub.s32 %s9, 2
    %s22 = sadd.s32 1, %s17
    %p23 = scmp.ge.s32.totalorder %s22, 1
    %s24 = scalar_select %p23, 0, %s22
    %s25 = sadd.s32 1, %s16
    %s26 = scalar_select %p23, %s25, %s16
    %p27 = scmp.ge.s32.totalorder %s26, 2
    %s28 = scalar_select %p27, 0, %s26
    %s29 = ssub.s32 %s16, %s28
    %s30 = ssub.s32 %s17, %s24
    %s31 = sor.u32 %s29, %s30
    %p32 = scmp.eq.s32.totalorder %s31, 0
    %s34 = sadd.s32 %s33, 1
    %s35 = scalar_select %p32, %s33, %s34
    %p38 = pneg %p32
    %p39 = scmp.eq.s32.totalorder %s9, 1
    %p40 = por %p38, %p39
    %p41 = scmp.ne.s32.totalorder %s33, %s36
    %p42 = scmp.eq.s32.totalorder %s9, 0
    %p43 = por %p41, %p42
    %p44 = scmp.ne.s32.totalorder %s33, %s36
    %p45 = scmp.eq.s32.totalorder %s14, 1
    %p46 = por %p44, %p45
    %p47 = scmp.ne.s32.totalorder %s36, %s37
    %p48 = scmp.eq.s32.totalorder %s14, 0
    %p49 = por %p47, %p48
    %p50 = scmp.ne.s32.totalorder %s36, %s37
    %p51 = scmp.eq.s32.totalorder %s15, 1
    %p52 = por %p50, %p51
    %p54 = scmp.ne.s32.totalorder %s37, %s53
    %p55 = scmp.eq.s32.totalorder %s15, 0
    %p56 = por %p54, %p55
    %s58 = sadd.s32 %s57, 1
    %p61 = scmp.eq.s32.totalorder %s9, 1
    %p62 = scmp.ne.s32.totalorder %s57, %s59
    %p63 = scmp.eq.s32.totalorder %s9, 0
    %p64 = por %p62, %p63
    %p65 = scmp.ne.s32.totalorder %s57, %s59
    %p66 = scmp.eq.s32.totalorder %s14, 1
    %p67 = por %p65, %p66
    %p68 = scmp.ne.s32.totalorder %s59, %s60
    %p69 = scmp.eq.s32.totalorder %s14, 0
    %p70 = por %p68, %p69
    %p71 = scmp.ne.s32.totalorder %s59, %s60
    %p72 = scmp.eq.s32.totalorder %s15, 1
    %p73 = por %p71, %p72
    %p75 = scmp.ne.s32.totalorder %s60, %s74
    %p76 = scmp.eq.s32.totalorder %s15, 0
    %p77 = por %p75, %p76
    %s79 = sadd.s32 %s78, 1
    %p82 = scmp.eq.s32.totalorder %s9, 1
    %p83 = scmp.ne.s32.totalorder %s78, %s80
    %p84 = scmp.eq.s32.totalorder %s9, 0
    %p85 = por %p83, %p84
    %p86 = scmp.ne.s32.totalorder %s78, %s80
    %p87 = scmp.eq.s32.totalorder %s14, 1
    %p88 = por %p86, %p87
    %p89 = scmp.ne.s32.totalorder %s80, %s81
    %p90 = scmp.eq.s32.totalorder %s14, 0
    %p91 = por %p89, %p90
    %p92 = scmp.ne.s32.totalorder %s80, %s81
    %p93 = scmp.eq.s32.totalorder %s15, 1
    %p94 = por %p92, %p93
    %p96 = scmp.ne.s32.totalorder %s81, %s95
    %p97 = scmp.eq.s32.totalorder %s15, 0
    %p98 = por %p96, %p97
    %s99 = ssub.s32 %s16, %s28
    %s100 = ssub.s32 %s17, %s24
    %s101 = sor.u32 %s99, %s100
    %p102 = scmp.eq.s32.totalorder %s101, 0
    %s104 = sadd.s32 %s103, 1
    %s105 = scalar_select %p102, %s103, %s104
    %p108 = pneg %p102
    %p109 = scmp.eq.s32.totalorder %s9, 1
    %p110 = por %p108, %p109
    %p111 = scmp.ne.s32.totalorder %s103, %s106
    %p112 = scmp.eq.s32.totalorder %s9, 0
    %p113 = por %p111, %p112
    %p114 = scmp.ne.s32.totalorder %s103, %s106
    %p115 = scmp.eq.s32.totalorder %s14, 1
    %p116 = por %p114, %p115
    %p117 = scmp.ne.s32.totalorder %s106, %s107
    %p118 = scmp.eq.s32.totalorder %s14, 0
    %p119 = por %p117, %p118
    %p120 = scmp.ne.s32.totalorder %s106, %s107
    %p121 = scmp.eq.s32.totalorder %s15, 1
    %p122 = por %p120, %p121
    %p124 = scmp.ne.s32.totalorder %s107, %s123
    %p125 = scmp.eq.s32.totalorder %s15, 0
    %p126 = por %p124, %p125
    %p127 = scmp.le.s32.totalorder 1, %s9
    %p128 = scmp.lt.s32.totalorder %s9, 3
    %p129 = pnand %p127, %p128
    %p130 = pneg %p129
    // Predicated region
    $region9: #{downsampling_conv_block.1} parent=5 // pred_check
      _
    $region10: #{downsampling_conv_block.1} parent=5 // pred_check_branch
      %132 = sbr.rel (%p129) target = $region12
    $region11: #{downsampling_conv_block.1} parent=5 // pred_region
      %s133 = ssub.s32 %s9, 1
      // Predicated region
      $region13: #{downsampling_conv_block.1} parent=11 // pred_check
        %p134 = pneg %p70
      $region14: #{downsampling_conv_block.1} parent=11 // pred_check_branch
        %136 = sbr.rel (%p134) target = $region16
      $region15: #{downsampling_conv_block.1} parent=11 // pred_region
        _
      $region16: #{downsampling_conv_block.1} parent=11 // pred_fallthru
        _
      // Predicated region
      $region17: #{downsampling_conv_block.1} parent=11 // pred_check
        %p137 = pneg %p91
      $region18: #{downsampling_conv_block.1} parent=11 // pred_check_branch
        %139 = sbr.rel (%p137) target = $region20
      $region19: #{downsampling_conv_block.1} parent=11 // pred_region
        _
      $region20: #{downsampling_conv_block.1} parent=11 // pred_fallthru
        _
    $region12: #{downsampling_conv_block.1} parent=5 // pred_fallthru
      _
    %p140 = scmp.lt.s32.totalorder %s9, 2
    // Predicated region
    $region21: #{downsampling_conv_block.1} parent=5 // pred_check
      %p141 = pneg %p140
    $region22: #{downsampling_conv_block.1} parent=5 // pred_check_branch
      %143 = sbr.rel (%p141) target = $region24
    $region23: #{downsampling_conv_block.1} parent=5 // pred_region
      // Predicated region
      $region25: #{downsampling_conv_block.1} parent=23 // pred_check
        %p144 = pneg %p43
      $region26: #{downsampling_conv_block.1} parent=23 // pred_check_branch
        %146 = sbr.rel (%p144) target = $region28
      $region27: #{downsampling_conv_block.1} parent=23 // pred_region
        %p147 = scmp.lt.s32.totalorder %s16, 1
        %s148 = scalar_select %p147, %s16, 1
        %p149 = scmp.lt.s32.totalorder %s17, 0
        %s150 = scalar_select %p149, %s17, 0
        %s151 = smul.addr %s150, 10
        %s152 = smul.addr %s148, 10
        %s153 = sadd.s32 %s151, %s152
        %s154 = smul.addr %s153, 4
        %s155 = scalar_lea.vmem %s0, %s154
      $region28: #{downsampling_conv_block.1} parent=23 // pred_fallthru
        _
    $region24: #{downsampling_conv_block.1} parent=5 // pred_fallthru
      _
    %p156 = scmp.le.s32.totalorder 1, %s9
    %p157 = scmp.lt.s32.totalorder %s9, 3
    %p158 = pnand %p156, %p157
    %p159 = pneg %p158
    // Predicated region
    $region29: #{downsampling_conv_block.1} parent=5 // pred_check
      _
    $region30: #{downsampling_conv_block.1} parent=5 // pred_check_branch
      %161 = sbr.rel (%p158) target = $region32
    $region31: #{downsampling_conv_block.1} parent=5 // pred_region
      %s162 = ssub.s32 %s9, 1
      %p163 = scmp.lt.s32.totalorder %s18, 1
      %s164 = scalar_select %p163, %s18, 1
      %p165 = scmp.lt.s32.totalorder %s19, 0
      %s166 = scalar_select %p165, %s19, 0
      %s167 = smul.addr %s166, 10
      %s168 = smul.addr %s164, 10
      %s169 = sadd.s32 %s167, %s168
      %s170 = smul.addr %s169, 4
      %s171 = scalar_lea.vmem %s0, %s170
      %p172 = pneg %p49
      %p173 = pneg %p46
      %p174 = pneg %p70
      %p175 = pneg %p67
      %p176 = pneg %p91
      %p177 = pneg %p88
      %p178 = pneg %p119
      %p179 = pneg %p116
      %p180 = scmp.lt.s32.totalorder %s18, 1
      %s181 = scalar_select %p180, %s18, 1
      %p182 = scmp.lt.s32.totalorder %s19, 0
      %s183 = scalar_select %p182, %s19, 0
      %s184 = smul.addr %s183, 2
      %s185 = smul.addr %s181, 16
      %s186 = sadd.s32 %s184, %s185
      %s187 = scalar_lea.vmem %s3, %s186
      %p188 = scmp.lt.s32.totalorder %s18, 1
      %s189 = scalar_select %p188, %s18, 1
      %p190 = scmp.lt.s32.totalorder %s19, 0
      %s191 = scalar_select %p190, %s19, 0
      %s192 = smul.addr %s191, 10
      %s193 = smul.addr %s189, 10
      %s194 = sadd.s32 %s192, %s193
      %s195 = smul.addr %s194, 4
      %s196 = scalar_lea.vmem %s0, %s195
      %p197 = scmp.lt.s32.totalorder %s18, 1
      %s198 = scalar_select %p197, %s18, 1
      %p199 = scmp.lt.s32.totalorder %s19, 0
      %s200 = scalar_select %p199, %s19, 0
      %s201 = smul.addr %s200, 2
      %s202 = smul.addr %s198, 16
      %s203 = sadd.s32 %s201, %s202
      %s204 = scalar_lea.vmem %s3, %s203
      %v206 = vld [vmem:[%s1] sm:$0xf]
      %v207 = vld [vmem:[%s196] sm:$0xff]
      %v208 = vld [vmem:[%s196 + $0x8] sm:$0xff]
      %v209 = vld [vmem:[%s196 + $0x10] sm:$0xff]
      %v210 = vld [vmem:[%s196 + $0x18] sm:$0xff]
      %v211 = vld [vmem:[%s196 + $0x20] sm:$0x33]
      %s212 = scalar_lea.vmem %s1, 4
      %v213 = vld [vmem:[%s212] sm:$0xf]
      %v219 = vunpack.c.l.b16 %v207
      %v220 = vunpack.c.h.b16 %v207
      %v221 = vunpack.c.l.b16 %v208
      %v222 = vunpack.c.h.b16 %v208
      %v223 = vunpack.c.l.b16 %v209
      %v224 = vunpack.c.h.b16 %v209
      %v225 = vunpack.c.l.b16 %v210
      %v226 = vunpack.c.h.b16 %v210
      %v227 = vunpack.c.l.b16 %v211
      %v228 = vunpack.c.h.b16 %v211
      %v229 = vpack.c.b16 %v221, %v219
      %v230 = vpack.c.b16 %v222, %v220
      %v231 = vpack.c.b16 %v225, %v223
      %v232 = vpack.c.b16 %v226, %v224
      %v233 = vpack.c.b16 %v227, %v227
      %v234 = vpack.c.b16 %v228, %v228
      %235 = vrot.lane.b32.xlu0 %v229, 127
      %v236 = vpop.permute.xlu0 %235
      %237 = vrot.lane.b32.xlu0 %v230, 127
      %v238 = vpop.permute.xlu0 %237
      %239 = vrot.lane.b32.xlu0 %v231, 127
      %v240 = vpop.permute.xlu0 %239
      %241 = vrot.lane.b32.xlu0 %v232, 127
      %v242 = vpop.permute.xlu0 %241
      %243 = vrot.lane.b32.xlu0 %v233, 127
      %v244 = vpop.permute.xlu0 %243
      %245 = vrot.lane.b32.xlu0 %v234, 127
      %v246 = vpop.permute.xlu0 %245
      %vm247 = vcmask 1039360
      %v248 = vsel %vm247, %v236, %v238
      %v249 = vsel %vm247, %v240, %v242
      %v250 = vsel %vm247, %v244, %v246
      %vm255 = vcmask 293888
      %v257 = vsel %vm255, %v213, 0
      %vm259 = vcmask 1041408
      %v261 = vsel %vm259, %v250, 0
      %v264 = vsel %vm259, %v246, 0
      %266 = vmatprep.subr.bf16.mxu0 0
      %267 = vmatpush1.bf16.msra.mxu0 0
      %268 = vmatprep.subr.bf16.mxu0 0
      %269 = vmatpush1.bf16.msra.mxu0 0
      %270 = vmatprep.subr.bf16.mxu0 0
      %271 = vmatpush1.bf16.msra.mxu0 0
      %272 = vmatprep.subr.bf16.mxu0 0
      %273 = vmatpush1.bf16.msra.mxu0 0
      %274 = vmatprep.subr.bf16.mxu0 0
      %275 = vmatpush1.bf16.msra.mxu0 0
      %276 = vmatprep.subr.bf16.mxu0 %v264
      %277 = vmatpush1.bf16.msra.mxu0 %v261
      %278 = vmatprep.subr.bf16.mxu0 %v242
      %279 = vmatpush1.bf16.msra.mxu0 %v249
      %280 = vmatprep.subr.bf16.mxu0 %v238
      %281 = vmatpush1.bf16.msra.mxu0 %v248
      %282 = vmatprep.subr.bf16.mxu0 0
      %283 = vmatpush2.bf16.msra.mxu0 0
      %284 = vmatprep.subr.bf16.mxu0 0
      %285 = vmatpush2.bf16.msra.mxu0 0
      %286 = vmatprep.subr.bf16.mxu0 0
      %287 = vmatpush2.bf16.msra.mxu0 0
      %288 = vmatprep.subr.bf16.mxu0 0
      %289 = vmatpush2.bf16.msra.mxu0 0
      %290 = vmatprep.subr.bf16.mxu0 0
      %291 = vmatpush2.bf16.msra.mxu0 0
      %292 = vmatprep.subr.bf16.mxu0 0
      %293 = vmatpush2.bf16.msra.mxu0 0
      %294 = vmatprep.subr.bf16.mxu0 0
      %295 = vmatpush2.bf16.msra.mxu0 0
      %296 = vmatprep.subr.bf16.mxu0 0
      %297 = vmatpush2.bf16.msra.mxu0 0
      %298 = vmatprep.mubr.bf16.mxu0 0
      %299 = vmatmul.mubr.bf16.gmra.mxu0 %v257
      %v300 = vpop.f32.mrf.mxu0
      %v301 = vadd.f32 0.0, %v300
      %v302 = vpop.f32.mrf.mxu0
      %v303 = vadd.f32 0.0, %v302
      %v304 = vpop.f32.mrf.mxu0
      %v305 = vpop.f32.mrf.mxu0
      %306 = vdwg.mxu0
      %v312 = vsel %vm255, %v206, 0
      %v315 = vsel %vm259, %v233, 0
      %v318 = vsel %vm259, %v234, 0
      %320 = vmatprep.subr.bf16.mxu0 0
      %321 = vmatpush1.bf16.msra.mxu0 0
      %322 = vmatprep.subr.bf16.mxu0 0
      %323 = vmatpush1.bf16.msra.mxu0 0
      %324 = vmatprep.subr.bf16.mxu0 0
      %325 = vmatpush1.bf16.msra.mxu0 0
      %326 = vmatprep.subr.bf16.mxu0 0
      %327 = vmatpush1.bf16.msra.mxu0 0
      %328 = vmatprep.subr.bf16.mxu0 0
      %329 = vmatpush1.bf16.msra.mxu0 0
      %330 = vmatprep.subr.bf16.mxu0 %v318
      %331 = vmatpush1.bf16.msra.mxu0 %v315
      %332 = vmatprep.subr.bf16.mxu0 %v232
      %333 = vmatpush1.bf16.msra.mxu0 %v231
      %334 = vmatprep.subr.bf16.mxu0 %v230
      %335 = vmatpush1.bf16.msra.mxu0 %v229
      %336 = vmatprep.subr.bf16.mxu0 0
      %337 = vmatpush2.bf16.msra.mxu0 0
      %338 = vmatprep.subr.bf16.mxu0 0
      %339 = vmatpush2.bf16.msra.mxu0 0
      %340 = vmatprep.subr.bf16.mxu0 0
      %341 = vmatpush2.bf16.msra.mxu0 0
      %342 = vmatprep.subr.bf16.mxu0 0
      %343 = vmatpush2.bf16.msra.mxu0 0
      %344 = vmatprep.subr.bf16.mxu0 0
      %345 = vmatpush2.bf16.msra.mxu0 0
      %346 = vmatprep.subr.bf16.mxu0 0
      %347 = vmatpush2.bf16.msra.mxu0 0
      %348 = vmatprep.subr.bf16.mxu0 0
      %349 = vmatpush2.bf16.msra.mxu0 0
      %350 = vmatprep.subr.bf16.mxu0 0
      %351 = vmatpush2.bf16.msra.mxu0 0
      %352 = vmatprep.mubr.bf16.mxu0 0
      %353 = vmatmul.mubr.bf16.gmra.mxu0 %v312
      %v354 = vpop.f32.mrf.mxu0
      %v355 = vadd.f32 %v301, %v354
      %v356 = vpop.f32.mrf.mxu0
      %v357 = vadd.f32 %v303, %v356
      %v358 = vpop.f32.mrf.mxu0
      %v359 = vpop.f32.mrf.mxu0
      %360 = vdwg.mxu0
      %s361 = scalar_lea.vmem %s1, 8
      %v362 = vld [vmem:[%s361] sm:$0xf]
      %363 = vrot.lane.b32.xlu0 %v229, 126
      %v364 = vpop.permute.xlu0 %363
      %365 = vrot.lane.b32.xlu0 %v230, 126
      %v366 = vpop.permute.xlu0 %365
      %367 = vrot.lane.b32.xlu0 %v231, 126
      %v368 = vpop.permute.xlu0 %367
      %369 = vrot.lane.b32.xlu0 %v232, 126
      %v370 = vpop.permute.xlu0 %369
      %371 = vrot.lane.b32.xlu0 %v233, 126
      %v372 = vpop.permute.xlu0 %371
      %373 = vrot.lane.b32.xlu0 %v234, 126
      %v374 = vpop.permute.xlu0 %373
      %vm375 = vcmask 1031168
      %v376 = vsel %vm375, %v364, %v366
      %v377 = vsel %vm375, %v368, %v370
      %v378 = vsel %vm375, %v372, %v374
      %v384 = vsel %vm255, %v362, 0
      %v387 = vsel %vm259, %v378, 0
      %v390 = vsel %vm259, %v374, 0
      %392 = vmatprep.subr.bf16.mxu0 0
      %393 = vmatpush1.bf16.msra.mxu0 0
      %394 = vmatprep.subr.bf16.mxu0 0
      %395 = vmatpush1.bf16.msra.mxu0 0
      %396 = vmatprep.subr.bf16.mxu0 0
      %397 = vmatpush1.bf16.msra.mxu0 0
      %398 = vmatprep.subr.bf16.mxu0 0
      %399 = vmatpush1.bf16.msra.mxu0 0
      %400 = vmatprep.subr.bf16.mxu0 0
      %401 = vmatpush1.bf16.msra.mxu0 0
      %402 = vmatprep.subr.bf16.mxu0 %v390
      %403 = vmatpush1.bf16.msra.mxu0 %v387
      %404 = vmatprep.subr.bf16.mxu0 %v370
      %405 = vmatpush1.bf16.msra.mxu0 %v377
      %406 = vmatprep.subr.bf16.mxu0 %v366
      %407 = vmatpush1.bf16.msra.mxu0 %v376
      %408 = vmatprep.subr.bf16.mxu0 0
      %409 = vmatpush2.bf16.msra.mxu0 0
      %410 = vmatprep.subr.bf16.mxu0 0
      %411 = vmatpush2.bf16.msra.mxu0 0
      %412 = vmatprep.subr.bf16.mxu0 0
      %413 = vmatpush2.bf16.msra.mxu0 0
      %414 = vmatprep.subr.bf16.mxu0 0
      %415 = vmatpush2.bf16.msra.mxu0 0
      %416 = vmatprep.subr.bf16.mxu0 0
      %417 = vmatpush2.bf16.msra.mxu0 0
      %418 = vmatprep.subr.bf16.mxu0 0
      %419 = vmatpush2.bf16.msra.mxu0 0
      %420 = vmatprep.subr.bf16.mxu0 0
      %421 = vmatpush2.bf16.msra.mxu0 0
      %422 = vmatprep.subr.bf16.mxu0 0
      %423 = vmatpush2.bf16.msra.mxu0 0
      %424 = vmatprep.mubr.bf16.mxu0 0
      %425 = vmatmul.mubr.bf16.gmra.mxu0 %v384
      %v426 = vpop.f32.mrf.mxu0
      %v427 = vadd.f32 0.0, %v426
      %v428 = vpop.f32.mrf.mxu0
      %v429 = vadd.f32 0.0, %v428
      %v430 = vpop.f32.mrf.mxu0
      %v431 = vpop.f32.mrf.mxu0
      %432 = vdwg.mxu0
      %v433 = vadd.f32 %v355, %v427
      %v434 = vadd.f32 %v357, %v429
      %v435 = vld [vmem:[%s2] sm:$0xff]
      %437 = vset.pattern.permute.xlu0 0
      %438 = vperm.xlu0 %437, %v435
      %v439 = vpop.permute.xlu0 %438
      %v441 = vadd.f32 %v433, %v439
      %v442 = vadd.f32 %v434, %v439
      %v443 = vmax.f32 %v441, 0.0
      %v444 = vmax.f32 %v442, 0.0
      %v447 = vcombine.low %v443, %v444
      %v448 = vcombine.high %v443, %v444
      %v450 = vunpack.c.l.s4 1966171168
      %v451 = vunpack.c.0.s8 %v450
      %v452 = vlaneseq
      %v453 = vshrl.u32 %v452, 7
      %v454 = vsub.s32 %v451, %v453
      %v455 = vrot.slane %v447, %v454
      %v457 = vunpack.c.l.s4 1966171168
      %v458 = vunpack.c.0.s8 %v457
      %v459 = vlaneseq
      %v460 = vshrl.u32 %v459, 7
      %v461 = vsub.s32 %v458, %v460
      %v462 = vrot.slane %v448, %v461
      %v463 = vcombine.high %v455, %v455
      %v464 = vcombine.high %v462, %v462
      %v466 = vunpack.c.l.s4 1966171168
      %v467 = vunpack.c.0.s8 %v466
      %v468 = vlaneseq
      %v469 = vshrl.u32 %v468, 7
      %v470 = vsub.s32 %v467, %v469
      %v471 = vrot.slane %v455, %v470
      %v473 = vunpack.c.l.s4 1966171168
      %v474 = vunpack.c.0.s8 %v473
      %v475 = vlaneseq
      %v476 = vshrl.u32 %v475, 7
      %v477 = vsub.s32 %v474, %v476
      %v478 = vrot.slane %v462, %v477
      %v480 = vunpack.c.l.s4 1966171168
      %v481 = vunpack.c.0.s8 %v480
      %v482 = vlaneseq
      %v483 = vshrl.u32 %v482, 7
      %v484 = vsub.s32 %v481, %v483
      %v485 = vrot.slane %v463, %v484
      %v487 = vunpack.c.l.s4 1966171168
      %v488 = vunpack.c.0.s8 %v487
      %v489 = vlaneseq
      %v490 = vshrl.u32 %v489, 7
      %v491 = vsub.s32 %v488, %v490
      %v492 = vrot.slane %v464, %v491
      %v493 = vcombine.high %v471, %v471
      %v494 = vcombine.high %v478, %v478
      %v495 = vcombine.high %v485, %v485
      %v496 = vcombine.high %v492, %v492
      %v505 = vlaneseq
      %vm506 = vcmp.ge.s32.totalorder %v505, 0
      %vm507 = vcmp.lt.s32.totalorder %v505, 160
      %vm508 = vmand %vm506, %vm507
      %509 = vst.msk [vmem:[%s204] sm:$0x3] %vm508, %v471
      %510 = vst.msk [vmem:[%s204 + $0x2] sm:$0x3] %vm508, %v485
      %511 = vst.msk [vmem:[%s204 + $0x4] sm:$0x3] %vm508, %v493
      %512 = vst.msk [vmem:[%s204 + $0x6] sm:$0x3] %vm508, %v495
      %513 = vst.msk [vmem:[%s204 + $0x8] sm:$0x3] %vm508, %v478
      %514 = vst.msk [vmem:[%s204 + $0xa] sm:$0x3] %vm508, %v492
      %515 = vst.msk [vmem:[%s204 + $0xc] sm:$0x3] %vm508, %v494
      %516 = vst.msk [vmem:[%s204 + $0xe] sm:$0x3] %vm508, %v496
      %p517 = scmp.lt.s32.totalorder %s18, 1
      %s518 = scalar_select %p517, %s18, 1
      %p519 = scmp.lt.s32.totalorder %s19, 0
      %s520 = scalar_select %p519, %s19, 0
      %s521 = smul.addr %s520, 2
      %s522 = smul.addr %s518, 16
      %s523 = sadd.s32 %s521, %s522
      %s524 = scalar_lea.vmem %s3, %s523
      // Predicated region
      $region33: #{downsampling_conv_block.1} parent=31 // pred_check
        %p525 = pneg %p116
      $region34: #{downsampling_conv_block.1} parent=31 // pred_check_branch
        %527 = sbr.rel (%p525) target = $region36
      $region35: #{downsampling_conv_block.1} parent=31 // pred_region
        _
      $region36: #{downsampling_conv_block.1} parent=31 // pred_fallthru
        _
    $region32: #{downsampling_conv_block.1} parent=5 // pred_fallthru
      _
    %p528 = scmp.le.s32.totalorder 2, %s9
    // Predicated region
    $region37: #{downsampling_conv_block.1} parent=5 // pred_check
      %p529 = pneg %p528
    $region38: #{downsampling_conv_block.1} parent=5 // pred_check_branch
      %531 = sbr.rel (%p529) target = $region40
    $region39: #{downsampling_conv_block.1} parent=5 // pred_region
      %s532 = ssub.s32 %s9, 2
      // Predicated region
      $region41: #{downsampling_conv_block.1} parent=39 // pred_check
        %p533 = pneg %p122
      $region42: #{downsampling_conv_block.1} parent=39 // pred_check_branch
        %535 = sbr.rel (%p533) target = $region44
      $region43: #{downsampling_conv_block.1} parent=39 // pred_region
        %p536 = scmp.lt.s32.totalorder %s20, 1
        %s537 = scalar_select %p536, %s20, 1
        %p538 = scmp.lt.s32.totalorder %s21, 0
        %s539 = scalar_select %p538, %s21, 0
        %s540 = smul.addr %s539, 2
        %s541 = smul.addr %s537, 16
        %s542 = sadd.s32 %s540, %s541
        %s543 = scalar_lea.vmem %s3, %s542
      $region44: #{downsampling_conv_block.1} parent=39 // pred_fallthru
        _
    $region40: #{downsampling_conv_block.1} parent=5 // pred_fallthru
      _
  $region6: #{downsampling_conv_block.1} parent=0 // loop_footer
    %s13 = sadd.s32 1, %s9
  $region7: #{downsampling_conv_block.1} parent=0 // loop_footer_branch
    %8 = sbr.rel target = $region3
  $region8: #{downsampling_conv_block.1} parent=0 // loop_exit
    _

</llo_original>
